<compile_context>
chip_gen: v5e
topology: v5e:2x2
jax: 0.10.0
libtpu: 0.0.40
codegen_flags: <defaults>
</compile_context>

<pallas_src>
import functools

import jax
import jax.numpy as jnp
from jax.experimental import pallas as pl
from jax.experimental.pallas import tpu as pltpu


def _rmsnorm_kernel(x_ref, w_ref, o_ref, *, eps, offset):
    # x_ref: (TILE_ROWS, H) block, w_ref: (1, H) block (broadcast over rows)
    x = x_ref[...].astype(jnp.float32)
    w = w_ref[...].astype(jnp.float32)
    mean_sq = jnp.mean(x * x, axis=-1, keepdims=True)
    rstd = jax.lax.rsqrt(mean_sq + eps)
    y = (x * rstd) * (offset + w)
    o_ref[...] = y.astype(o_ref.dtype)


def _vmem_capacity_bytes():
    """Physical per-core VMEM; conservative fallback if the query is unavailable."""
    try:
        return int(pltpu.get_tpu_info().vmem_capacity_bytes)
    except Exception:
        return 64 * 1024 * 1024  # v7x-safe lower bound (v5e/v6e have 128 MiB)


def _pick_tile_rows(rows, hidden, in_dtype, out_dtype):
    """Largest dtype-aligned row tile whose double-buffered in+out tiles fit VMEM."""
    in_bytes = jnp.dtype(in_dtype).itemsize
    out_bytes = jnp.dtype(out_dtype).itemsize
    # Sublane packing: 8 for 32-bit, 16 for bf16/fp16, 32 for int8/fp8.
    pack = max(8, 32 // min(in_bytes, out_bytes))

    vmem_cap = _vmem_capacity_bytes()
    # Budget for the pipelined tiles: stay well under physical capacity
    # (generation-aware: on v7x this caps at 32 MiB, on v5e/v6e at 48 MiB).
    budget = min(vmem_cap // 2, 48 * 1024 * 1024)

    # 2 double-buffers each for the input tile and the output tile.
    bytes_per_row = hidden * (in_bytes + out_bytes) * 2
    max_rows = max(pack, budget // max(bytes_per_row, 1))
    tile = (max_rows // pack) * pack
    tile = min(tile, 1024)  # beyond this the DMA is already roofline-sized

    # Don't exceed the (pack-rounded) number of rows actually present.
    rows_up = ((rows + pack - 1) // pack) * pack
    tile = min(tile, rows_up)
    return max(tile, pack)


def liger_rms_norm(x, weight, eps=1e-6, offset=0.0, *, tile_rows=None):
    """RMSNorm over the last axis of `x`, scale by (offset + weight)."""
    orig_shape = x.shape
    hidden = orig_shape[-1]
    assert weight.shape == (hidden,)

    x2d = x.reshape(-1, hidden)
    rows = x2d.shape[0]
    out_dtype = x.dtype

    if tile_rows is None:
        tile_rows = _pick_tile_rows(rows, hidden, x.dtype, out_dtype)

    w2d = weight.reshape(1, hidden)

    # No jnp.pad: cdiv grid, Pallas masks the final partial block.
    grid = (pl.cdiv(rows, tile_rows),)

    # Scoped VMEM: double-buffered in/out tiles + double-buffered weight + headroom.
    in_bytes = jnp.dtype(x.dtype).itemsize
    out_bytes = jnp.dtype(out_dtype).itemsize
    w_bytes = jnp.dtype(weight.dtype).itemsize
    needed = (tile_rows * hidden * (in_bytes + out_bytes) * 2
              + hidden * w_bytes * 2)
    vmem_limit = min(int(needed * 1.25) + (2 << 20),
                     int(_vmem_capacity_bytes() * 0.9))

    out = pl.pallas_call(
        functools.partial(_rmsnorm_kernel, eps=float(eps), offset=float(offset)),
        out_shape=jax.ShapeDtypeStruct((rows, hidden), out_dtype),
        grid_spec=pltpu.PrefetchScalarGridSpec(
            num_scalar_prefetch=0,
            grid=grid,
            in_specs=[
                pl.BlockSpec((tile_rows, hidden), lambda i: (i, 0)),
                # Constant block index -> weight stays resident across the grid.
                pl.BlockSpec((1, hidden), lambda i: (0, 0)),
            ],
            out_specs=pl.BlockSpec((tile_rows, hidden), lambda i: (i, 0)),
        ),
        compiler_params=pltpu.CompilerParams(
            dimension_semantics=("parallel",),
            vmem_limit_bytes=vmem_limit,
        ),
    )(x2d, w2d)

    return out.reshape(orig_shape)


if __name__ == "__main__":
    key = jax.random.PRNGKey(0)
    batch, seq, hidden = 2, 8, 32
    eps, offset = 1e-6, 0.0

    x = jax.random.normal(key, (batch, seq, hidden), dtype=jnp.float32)
    # init_fn='ones' -> weight initialized to ones (deterministic).
    weight = jnp.ones((hidden,), dtype=jnp.float32)

    out = liger_rms_norm(x, weight, eps=eps, offset=offset)
    out = jax.block_until_ready(out)

    # Reference check (pure JAX, gemma casting mode).
    x32 = x.astype(jnp.float32)
    rstd = jax.lax.rsqrt(jnp.mean(x32 * x32, axis=-1, keepdims=True) + eps)
    ref = ((x32 * rstd) * (offset + weight.astype(jnp.float32))).astype(x.dtype)
    assert jnp.allclose(out, ref, atol=1e-5, rtol=1e-5), "mismatch vs reference"

    print("KERNEL_OK")
</pallas_src>

<mosaic_0001>
module attributes {stable_mosaic.version = 11 : i64} {
  func.func @_rmsnorm_kernel(%arg0: i32, %arg1: memref<16x32xf32, #tpu.memory_space<vmem>>, %arg2: memref<1x32xf32, #tpu.memory_space<vmem>>, %arg3: memref<16x32xf32, #tpu.memory_space<vmem>>) attributes {dimension_semantics = [#tpu.dimension_semantics<parallel>], iteration_bounds = array<i64: 1>, scalar_prefetch = 0 : i64, scratch_operands = 0 : i64, tpu.core_type = #tpu.core_type<tc>, window_params = [{transform_indices = @transform_0, window_bounds = array<i64: 16, 32>}, {pipeline_mode = #tpu.pipeline_mode<synchronous>, transform_indices = @transform_1, window_bounds = array<i64: 1, 32>}, {transform_indices = @transform_2, window_bounds = array<i64: 16, 32>}]} {
    %c0 = arith.constant 0 : index
    %c0_0 = arith.constant 0 : index
    %0 = vector.load %arg1[%c0, %c0_0] : memref<16x32xf32, #tpu.memory_space<vmem>>, vector<16x32xf32>
    %c0_1 = arith.constant 0 : index
    %c0_2 = arith.constant 0 : index
    %1 = vector.load %arg2[%c0_1, %c0_2] : memref<1x32xf32, #tpu.memory_space<vmem>>, vector<1x32xf32>
    %2 = arith.mulf %0, %0 : vector<16x32xf32>
    %cst = arith.constant dense<0.000000e+00> : vector<16xf32>
    %3 = vector.multi_reduction <add>, %2, %cst [1] : vector<16x32xf32> to vector<16xf32>
    %4 = vector.shape_cast %3 : vector<16xf32> to vector<16x1xf32>
    %cst_3 = arith.constant 3.200000e+01 : f32
    %5 = vector.broadcast %cst_3 : f32 to vector<16x1xf32>
    %6 = arith.divf %4, %5 : vector<16x1xf32>
    %cst_4 = arith.constant 9.99999997E-7 : f32
    %7 = vector.broadcast %cst_4 : f32 to vector<16x1xf32>
    %8 = arith.addf %6, %7 : vector<16x1xf32>
    %9 = math.rsqrt %8 : vector<16x1xf32>
    %10 = vector.broadcast %9 : vector<16x1xf32> to vector<16x32xf32>
    %11 = arith.mulf %0, %10 : vector<16x32xf32>
    %cst_5 = arith.constant 0.000000e+00 : f32
    %12 = vector.broadcast %cst_5 : f32 to vector<1x32xf32>
    %13 = arith.addf %12, %1 : vector<1x32xf32>
    %14 = vector.broadcast %13 : vector<1x32xf32> to vector<16x32xf32>
    %15 = arith.mulf %11, %14 : vector<16x32xf32>
    %c0_6 = arith.constant 0 : index
    %c0_7 = arith.constant 0 : index
    %16 = vector.load %arg3[%c0_6, %c0_7] : memref<16x32xf32, #tpu.memory_space<vmem>>, vector<16x32xf32>
    tpu.vector_store %arg3[%c0_6, %c0_7], %15 {strides = array<i32>} : memref<16x32xf32, #tpu.memory_space<vmem>>, vector<16x32xf32>,
    return
  }
  func.func @transform_0(%arg0: i32) -> (i32, i32) {
    %c0_i32 = arith.constant 0 : i32
    %c0_i32_0 = arith.constant 0 : i32
    return %arg0, %c0_i32 : i32, i32
  }
  func.func @transform_1(%arg0: i32) -> (i32, i32) {
    %c0_i32 = arith.constant 0 : i32
    %c0_i32_0 = arith.constant 0 : i32
    %c0_i32_1 = arith.constant 0 : i32
    return %c0_i32, %c0_i32_0 : i32, i32
  }
  func.func @transform_2(%arg0: i32) -> (i32, i32) {
    %c0_i32 = arith.constant 0 : i32
    %c0_i32_0 = arith.constant 0 : i32
    return %arg0, %c0_i32 : i32, i32
  }
}

</mosaic_0001>

<llo_original>
// kernel: tpu_custom_call.1
$region0: #{tpu_custom_call.1}
  #allocation0 [shape = 'u32[]', space=smem, size = 0x4, offset = 0x4, fixed_abs, tag = 'smem constant byte address 0x4 - core index']
  #allocation1 [shape = 'u32[72,128]{1,0:T(1,128)}', space=vmem, size = 0x9000, scoped, tag = 'internal scratch']
  %s0 = inlined_call_operand.hbm [shape: f32[16,32], index: 0, kind: input, shape index: {}]
  %s1 = inlined_call_operand.hbm [shape: f32[1,32], index: 1, kind: input, shape index: {}]
  %s2 = inlined_call_operand.hbm [shape: f32[16,32], index: 2, kind: output, shape index: {}]
  %s3 = sld [smem:[#allocation0]]
  $region26: #{tpu_custom_call.1} parent=0
    _
  %s5 = ssub.s32 1, %s3
  %s6 = scalar_select 0, %s5, %s3
  $region1: #{tpu_custom_call.1} parent=0
    #allocation2 [shape = 'u8[8192]{0}', space=vmem, size = 0x2000, scoped, tag = 'input window, operand 0, single buffered']
    #allocation3 [shape = 's32[1]{0}', space=sflag, size = 0x4, scoped, tag = 'scoped memory for tpu_custom_call.1']
    #allocation4 [shape = 's32[1]{0}', space=sflag, size = 0x4, scoped, tag = 'scoped memory for tpu_custom_call.1']
    #allocation5 [shape = 'u8[512]{0}', space=vmem, size = 0x400, scoped, tag = 'input window, operand 1, single buffered']
    #allocation6 [shape = 's32[1]{0}', space=sflag, size = 0x4, scoped, tag = 'scoped memory for tpu_custom_call.1']
    #allocation7 [shape = 'u8[8192]{0}', space=vmem, size = 0x2000, scoped, tag = 'output window, operand 0, single buffered']
    %7 = vsyncpa [#allocation3], 0
    %8 = vsyncpa [#allocation6], 0
    %9 = vsyncpa [#allocation4], 0
    // Predicated region
    $region2: #{tpu_custom_call.1} parent=1 // pred_check
      _
    $region3: #{tpu_custom_call.1} parent=1 // pred_check_branch
      %11 = sbr.rel (0) target = $region5
    $region4: #{tpu_custom_call.1} parent=1 // pred_region
      %13 = vsyncadd [#allocation3], 0
      %s14 = sshll.u32 %s0, 4
      %s15 = int_to_ptr.hbm [resolvable:$true] %s14
      %s16 = sshll.u32 [#allocation2], 4
      %s17 = int_to_ptr.vmem [resolvable:$true] %s16
      %22 = dma.hbm_to_vmem [thread:$0]  %s15, 256, %s17, [#allocation3], 128, 128, 8
    $region5: #{tpu_custom_call.1} parent=1 // pred_fallthru
      _
    // Predicated region
    $region6: #{tpu_custom_call.1} parent=1 // pred_check
      _
    $region7: #{tpu_custom_call.1} parent=1 // pred_check_branch
      %24 = sbr.rel (0) target = $region9
    $region8: #{tpu_custom_call.1} parent=1 // pred_region
      %26 = vsyncadd [#allocation6], 0
      %s28 = sshll.u32 %s1, 4
      %s29 = int_to_ptr.hbm [resolvable:$true] %s28
      %s30 = sshll.u32 [#allocation5], 4
      %s31 = int_to_ptr.vmem [resolvable:$true] %s30
      %33 = dma.hbm_to_vmem [thread:$0]  %s29, 16, %s31, [#allocation6]
    $region9: #{tpu_custom_call.1} parent=1 // pred_fallthru
      _
    // Predicated region
    $region10: #{tpu_custom_call.1} parent=1 // pred_check
      _
    $region11: #{tpu_custom_call.1} parent=1 // pred_check_branch
      %35 = sbr.rel (0) target = $region13
    $region12: #{tpu_custom_call.1} parent=1 // pred_region
      %37 = dma.done [#allocation3], 256
    $region13: #{tpu_custom_call.1} parent=1 // pred_fallthru
      _
    // Predicated region
    $region14: #{tpu_custom_call.1} parent=1 // pred_check
      _
    $region15: #{tpu_custom_call.1} parent=1 // pred_check_branch
      %39 = sbr.rel (0) target = $region17
    $region16: #{tpu_custom_call.1} parent=1 // pred_region
      %41 = dma.done [#allocation6], 16
    $region17: #{tpu_custom_call.1} parent=1 // pred_fallthru
      _
    %v42 = vld [vmem:[#allocation2] sm:$0xff]
    %v43 = vld [vmem:[#allocation2 + $0x8] sm:$0xff]
    %v44 = vld [vmem:[#allocation5] sm:$0x1]
    %v45 = vmul.f32 %v42, %v42
    %v46 = vmul.f32 %v43, %v43
    %vm47 = vcmask 261120
    %v48 = vsel %vm47, %v45, 0.0
    %49 = vadd.xlane.f32.xlu0 %v48
    %v50 = vpop.xlane.xlu0 %49
    %v51 = vsel %vm47, %v46, 0.0
    %52 = vadd.xlane.f32.xlu0 %v51
    %v53 = vpop.xlane.xlu0 %52
    %v54 = vrcp.pop 32.0
    %v55 = vmul.f32 32.0, %v54
    %v56 = vsub.f32 1.0, %v55
    %v57 = vmul.f32 %v54, %v56
    %v58 = vadd.f32 %v54, %v57
    %vm59 = vweird.f32 %v54
    %v60 = vsel %vm59, %v54, %v58
    %v61 = vmul.f32 %v50, %v60
    %v62 = vmul.f32 %v53, %v60
    %v63 = vadd.f32 %v61, 1e-06
    %v64 = vadd.f32 %v62, 1e-06
    %v65 = vrsqrt.pop %v63
    %v66 = vmul.f32 %v65, %v63
    %v67 = vmul.f32 %v66, %v65
    %v68 = vmul.f32 0.5, %v67
    %v69 = vsub.f32 1.5, %v68
    %v70 = vmul.f32 %v65, %v69
    %vm71 = vweird.f32 %v63
    %vm72 = vweird.f32 %v65
    %vm73 = vmor %vm71, %vm72
    %v74 = vsel %vm73, %v65, %v70
    %v75 = vrsqrt.pop %v64
    %v76 = vmul.f32 %v75, %v64
    %v77 = vmul.f32 %v76, %v75
    %v78 = vmul.f32 0.5, %v77
    %v79 = vsub.f32 1.5, %v78
    %v80 = vmul.f32 %v75, %v79
    %vm81 = vweird.f32 %v64
    %vm82 = vweird.f32 %v75
    %vm83 = vmor %vm81, %vm82
    %v84 = vsel %vm83, %v75, %v80
    %v85 = vmul.f32 %v42, %v74
    %v86 = vmul.f32 %v43, %v84
    %v87 = vadd.f32 %v44, 0.0
    %v89 = vperm.slane %v87, 0
    %v91 = vmul.f32 %v85, %v89
    %v92 = vmul.f32 %v86, %v89
    %93 = vst.msk [vmem:[#allocation7] sm:$0xff] %vm47, %v91
    %94 = vst.msk [vmem:[#allocation7 + $0x8] sm:$0xff] %vm47, %v92
    // Predicated region
    $region18: #{tpu_custom_call.1} parent=1 // pred_check
      _
    $region19: #{tpu_custom_call.1} parent=1 // pred_check_branch
      %96 = sbr.rel (0) target = $region21
    $region20: #{tpu_custom_call.1} parent=1 // pred_region
      %98 = vsyncadd [#allocation4], 0
      %s99 = sshll.u32 [#allocation7], 4
      %s100 = int_to_ptr.vmem [resolvable:$true] %s99
      %s101 = sshll.u32 %s2, 4
      %s102 = int_to_ptr.hbm [resolvable:$true] %s101
      %107 = dma.vmem_to_hbm [thread:$0]  %s100, 256, %s102, [#allocation4], 128, 128, 8
    $region21: #{tpu_custom_call.1} parent=1 // pred_fallthru
      _
    // Predicated region
    $region22: #{tpu_custom_call.1} parent=1 // pred_check
      _
    $region23: #{tpu_custom_call.1} parent=1 // pred_check_branch
      %109 = sbr.rel (0) target = $region25
    $region24: #{tpu_custom_call.1} parent=1 // pred_region
      %111 = dma.done [#allocation4], 256
    $region25: #{tpu_custom_call.1} parent=1 // pred_fallthru
      _
    %112 = vsyncpa [#allocation3], 1
    %113 = vsyncpa [#allocation6], 1
    %114 = vsyncpa [#allocation4], 1

</llo_original>
